<compile_context>
chip_gen: v5e
topology: v5e:2x2
jax: 0.10.0
libtpu: 0.0.40
codegen_flags: <defaults>
</compile_context>

<pallas_src>
import jax
import jax.numpy as jnp
from jax.experimental import pallas as pl
from jax.experimental.pallas import tpu as pltpu

_F_PAD = 128          # padded width used for every layer (input + all hiddens)
_LAYER_DIMS = [(None, 128), (128, 32), (32, 16), (16, 1)]  # (in, out); in[0] = f_in


def _round_up(a, m):
    return (a + m - 1) // m * m


def _mlp_kernel(x_ref, w_ref, b_ref, o_ref):
    """Fused 4-layer MLP on one batch tile.

    x_ref : (TB, 128)   padded input tile
    w_ref : (4, 128, 128) stacked, zero-padded weights
    b_ref : (4, 1, 128)   stacked, zero-padded biases
    o_ref : (TB, 128)   column 0 holds the real output (rest is padding)
    """
    h = x_ref[...]
    for l in range(4):  # static unroll: 4 MXU matmuls + EUP sigmoids
        h = jnp.dot(h, w_ref[l], preferred_element_type=jnp.float32) + b_ref[l]
        h = jax.nn.sigmoid(h)
    o_ref[...] = h.astype(o_ref.dtype)


def _pack_params(params, f_in):
    """Stack the 4 (padded) weight matrices / biases into single operands."""
    assert f_in <= _F_PAD, "input feature width must fit in one 128-lane tile"
    w_all = jnp.zeros((4, _F_PAD, _F_PAD), jnp.float32)
    b_all = jnp.zeros((4, 1, _F_PAD), jnp.float32)
    dims_in = [f_in, 128, 32, 16]
    dims_out = [128, 32, 16, 1]
    for l in range(4):
        w = params[f"w{l + 1}"].astype(jnp.float32)
        b = params[f"b{l + 1}"].astype(jnp.float32).reshape(1, -1)
        w_all = w_all.at[l, : dims_in[l], : dims_out[l]].set(w)
        b_all = b_all.at[l, :, : dims_out[l]].set(b)
    return w_all, b_all


def memory_controller_forward(x, x_hat, params, *, batch_tile=512):
    """Pallas implementation of MemoryController.forward.

    x, x_hat: (bs, future, input_dim) float32
    params:   dict with w1..w4 (din,dout) and b1..b4 (1,dout)
    returns:  (bs, 1) float32
    """
    bs = x.shape[0]
    # Glue (plain JAX): flatten + concat, exactly like torch.flatten/torch.cat.
    x_flat = jnp.concatenate(
        [x.reshape(bs, -1), x_hat.reshape(bs, -1)], axis=1
    ).astype(jnp.float32)
    f_in = x_flat.shape[1]

    # --- choose batch tile -------------------------------------------------
    bs_p8 = _round_up(bs, 8)
    bt = min(_round_up(batch_tile, 8), bs_p8)
    # Ensure >= 2 grid steps when the batch is big enough (v7x has 2 TCs).
    if bs_p8 // bt < 2 and bs_p8 >= 256:
        bt = _round_up(-(-bs_p8 // 2), 8)
    bs_pad = _round_up(bs, bt)
    grid = bs_pad // bt

    # --- pad input (batch -> bs_pad, features -> 128) ----------------------
    x_pad = jnp.pad(x_flat, ((0, bs_pad - bs), (0, _F_PAD - f_in)))

    # --- pack weights / biases into single stacked operands ----------------
    w_all, b_all = _pack_params(params, f_in)

    out = pl.pallas_call(
        _mlp_kernel,
        out_shape=jax.ShapeDtypeStruct((bs_pad, _F_PAD), jnp.float32),
        grid_spec=pltpu.PrefetchScalarGridSpec(
            num_scalar_prefetch=0,
            grid=(grid,),
            in_specs=[
                pl.BlockSpec((bt, _F_PAD), lambda i: (i, 0)),
                pl.BlockSpec((4, _F_PAD, _F_PAD), lambda i: (0, 0, 0)),
                pl.BlockSpec((4, 1, _F_PAD), lambda i: (0, 0, 0)),
            ],
            out_specs=pl.BlockSpec((bt, _F_PAD), lambda i: (i, 0)),
        ),
        compiler_params=pltpu.CompilerParams(
            dimension_semantics=("parallel",)),
    )(x_pad, w_all, b_all)

    # Real result lives in column 0 of the first bs rows.
    return out[:bs, :1]


def init_params(key, f_in):
    """Deterministic init matching nn.Linear default (U(-1/sqrt(fan_in), +))."""
    dims = [(f_in, 128), (128, 32), (32, 16), (16, 1)]
    params = {}
    for idx, (din, dout) in enumerate(dims, start=1):
        key, kw, kb = jax.random.split(key, 3)
        bound = 1.0 / jnp.sqrt(din)
        params[f"w{idx}"] = jax.random.uniform(
            kw, (din, dout), jnp.float32, -bound, bound)
        params[f"b{idx}"] = jax.random.uniform(
            kb, (1, dout), jnp.float32, -bound, bound)
    return params


def reference_forward(x, x_hat, params):
    bs = x.shape[0]
    h = jnp.concatenate([x.reshape(bs, -1), x_hat.reshape(bs, -1)], axis=1)
    for idx in range(1, 5):
        h = jax.nn.sigmoid(h @ params[f"w{idx}"] + params[f"b{idx}"])
    return h


if __name__ == "__main__":
    # cfg['model_params']['future_num_frames'] = 8, input_dim = 3
    future_num_frames = 8
    input_dim = 3
    f_in = future_num_frames * (2 * input_dim)  # 48

    key = jax.random.PRNGKey(0)
    k_x, k_xhat, k_params = jax.random.split(key, 3)
    params = init_params(k_params, f_in)

    # Small demo batch (single grid step, tile padded to 8 sublanes).
    bs = 8
    x = jax.random.normal(k_x, (bs, future_num_frames, input_dim), jnp.float32)
    x_hat = jax.random.normal(k_xhat, (bs, future_num_frames, input_dim),
                              jnp.float32)
    out = jax.block_until_ready(memory_controller_forward(x, x_hat, params))
    ref = reference_forward(x, x_hat, params)
    assert out.shape == (bs, 1)
    assert jnp.allclose(out, ref, atol=1e-5, rtol=1e-5), (out, ref)

    # Second check: non-multiple batch + small tile exercises batch padding
    # and a multi-step ("parallel") grid.
    bs2 = 40
    k2a, k2b = jax.random.split(jax.random.PRNGKey(1))
    x2 = jax.random.normal(k2a, (bs2, future_num_frames, input_dim), jnp.float32)
    x2_hat = jax.random.normal(k2b, (bs2, future_num_frames, input_dim),
                               jnp.float32)
    out2 = jax.block_until_ready(
        memory_controller_forward(x2, x2_hat, params, batch_tile=16))
    ref2 = reference_forward(x2, x2_hat, params)
    assert out2.shape == (bs2, 1)
    assert jnp.allclose(out2, ref2, atol=1e-5, rtol=1e-5), (out2, ref2)

    print("KERNEL_OK")
</pallas_src>

<mosaic_0001>
module attributes {stable_mosaic.version = 11 : i64} {
  func.func @_mlp_kernel(%arg0: i32, %arg1: memref<8x128xf32, #tpu.memory_space<vmem>>, %arg2: memref<4x128x128xf32, #tpu.memory_space<vmem>>, %arg3: memref<4x1x128xf32, #tpu.memory_space<vmem>>, %arg4: memref<8x128xf32, #tpu.memory_space<vmem>>) attributes {dimension_semantics = [#tpu.dimension_semantics<parallel>], iteration_bounds = array<i64: 1>, scalar_prefetch = 0 : i64, scratch_operands = 0 : i64, tpu.core_type = #tpu.core_type<tc>, window_params = [{transform_indices = @transform_0, window_bounds = array<i64: 8, 128>}, {pipeline_mode = #tpu.pipeline_mode<synchronous>, transform_indices = @transform_1, window_bounds = array<i64: 4, 128, 128>}, {pipeline_mode = #tpu.pipeline_mode<synchronous>, transform_indices = @transform_2, window_bounds = array<i64: 4, 1, 128>}, {transform_indices = @transform_3, window_bounds = array<i64: 8, 128>}]} {
    %c0 = arith.constant 0 : index
    %c0_0 = arith.constant 0 : index
    %0 = vector.load %arg1[%c0, %c0_0] : memref<8x128xf32, #tpu.memory_space<vmem>>, vector<8x128xf32>
    %c0_1 = arith.constant 0 : index
    %c0_2 = arith.constant 0 : index
    %c0_3 = arith.constant 0 : index
    %1 = vector.load %arg2[%c0_1, %c0_2, %c0_3] : memref<4x128x128xf32, #tpu.memory_space<vmem>>, vector<1x128x128xf32>
    %2 = vector.shape_cast %1 : vector<1x128x128xf32> to vector<128x128xf32>
    %cst = arith.constant dense<0.000000e+00> : vector<8x128xf32>
    %3 = tpu.matmul %0, %2, %cst {dimension_numbers = #tpu.dot_dimension_numbers<[1], [0], [0], [1], [0, 0, 1, 1], [], []>} : vector<8x128xf32>, vector<128x128xf32>, vector<8x128xf32> -> vector<8x128xf32>
    %c0_4 = arith.constant 0 : index
    %c0_5 = arith.constant 0 : index
    %c0_6 = arith.constant 0 : index
    %4 = vector.load %arg3[%c0_4, %c0_5, %c0_6] : memref<4x1x128xf32, #tpu.memory_space<vmem>>, vector<1x1x128xf32>
    %5 = vector.shape_cast %4 : vector<1x1x128xf32> to vector<1x128xf32>
    %6 = vector.broadcast %5 : vector<1x128xf32> to vector<8x128xf32>
    %7 = arith.addf %3, %6 : vector<8x128xf32>
    %8 = arith.negf %7 : vector<8x128xf32>
    %9 = math.exp %8 : vector<8x128xf32>
    %cst_7 = arith.constant 1.000000e+00 : f32
    %10 = vector.broadcast %cst_7 : f32 to vector<8x128xf32>
    %11 = arith.addf %10, %9 : vector<8x128xf32>
    %12 = arith.divf %10, %11 : vector<8x128xf32>
    %c1 = arith.constant 1 : index
    %c0_8 = arith.constant 0 : index
    %c0_9 = arith.constant 0 : index
    %13 = vector.load %arg2[%c1, %c0_8, %c0_9] : memref<4x128x128xf32, #tpu.memory_space<vmem>>, vector<1x128x128xf32>
    %14 = vector.shape_cast %13 : vector<1x128x128xf32> to vector<128x128xf32>
    %cst_10 = arith.constant dense<0.000000e+00> : vector<8x128xf32>
    %15 = tpu.matmul %12, %14, %cst_10 {dimension_numbers = #tpu.dot_dimension_numbers<[1], [0], [0], [1], [0, 0, 1, 1], [], []>} : vector<8x128xf32>, vector<128x128xf32>, vector<8x128xf32> -> vector<8x128xf32>
    %c1_11 = arith.constant 1 : index
    %c0_12 = arith.constant 0 : index
    %c0_13 = arith.constant 0 : index
    %16 = vector.load %arg3[%c1_11, %c0_12, %c0_13] : memref<4x1x128xf32, #tpu.memory_space<vmem>>, vector<1x1x128xf32>
    %17 = vector.shape_cast %16 : vector<1x1x128xf32> to vector<1x128xf32>
    %18 = vector.broadcast %17 : vector<1x128xf32> to vector<8x128xf32>
    %19 = arith.addf %15, %18 : vector<8x128xf32>
    %20 = arith.negf %19 : vector<8x128xf32>
    %21 = math.exp %20 : vector<8x128xf32>
    %cst_14 = arith.constant 1.000000e+00 : f32
    %22 = vector.broadcast %cst_14 : f32 to vector<8x128xf32>
    %23 = arith.addf %22, %21 : vector<8x128xf32>
    %24 = arith.divf %22, %23 : vector<8x128xf32>
    %c2 = arith.constant 2 : index
    %c0_15 = arith.constant 0 : index
    %c0_16 = arith.constant 0 : index
    %25 = vector.load %arg2[%c2, %c0_15, %c0_16] : memref<4x128x128xf32, #tpu.memory_space<vmem>>, vector<1x128x128xf32>
    %26 = vector.shape_cast %25 : vector<1x128x128xf32> to vector<128x128xf32>
    %cst_17 = arith.constant dense<0.000000e+00> : vector<8x128xf32>
    %27 = tpu.matmul %24, %26, %cst_17 {dimension_numbers = #tpu.dot_dimension_numbers<[1], [0], [0], [1], [0, 0, 1, 1], [], []>} : vector<8x128xf32>, vector<128x128xf32>, vector<8x128xf32> -> vector<8x128xf32>
    %c2_18 = arith.constant 2 : index
    %c0_19 = arith.constant 0 : index
    %c0_20 = arith.constant 0 : index
    %28 = vector.load %arg3[%c2_18, %c0_19, %c0_20] : memref<4x1x128xf32, #tpu.memory_space<vmem>>, vector<1x1x128xf32>
    %29 = vector.shape_cast %28 : vector<1x1x128xf32> to vector<1x128xf32>
    %30 = vector.broadcast %29 : vector<1x128xf32> to vector<8x128xf32>
    %31 = arith.addf %27, %30 : vector<8x128xf32>
    %32 = arith.negf %31 : vector<8x128xf32>
    %33 = math.exp %32 : vector<8x128xf32>
    %cst_21 = arith.constant 1.000000e+00 : f32
    %34 = vector.broadcast %cst_21 : f32 to vector<8x128xf32>
    %35 = arith.addf %34, %33 : vector<8x128xf32>
    %36 = arith.divf %34, %35 : vector<8x128xf32>
    %c3 = arith.constant 3 : index
    %c0_22 = arith.constant 0 : index
    %c0_23 = arith.constant 0 : index
    %37 = vector.load %arg2[%c3, %c0_22, %c0_23] : memref<4x128x128xf32, #tpu.memory_space<vmem>>, vector<1x128x128xf32>
    %38 = vector.shape_cast %37 : vector<1x128x128xf32> to vector<128x128xf32>
    %cst_24 = arith.constant dense<0.000000e+00> : vector<8x128xf32>
    %39 = tpu.matmul %36, %38, %cst_24 {dimension_numbers = #tpu.dot_dimension_numbers<[1], [0], [0], [1], [0, 0, 1, 1], [], []>} : vector<8x128xf32>, vector<128x128xf32>, vector<8x128xf32> -> vector<8x128xf32>
    %c3_25 = arith.constant 3 : index
    %c0_26 = arith.constant 0 : index
    %c0_27 = arith.constant 0 : index
    %40 = vector.load %arg3[%c3_25, %c0_26, %c0_27] : memref<4x1x128xf32, #tpu.memory_space<vmem>>, vector<1x1x128xf32>
    %41 = vector.shape_cast %40 : vector<1x1x128xf32> to vector<1x128xf32>
    %42 = vector.broadcast %41 : vector<1x128xf32> to vector<8x128xf32>
    %43 = arith.addf %39, %42 : vector<8x128xf32>
    %44 = arith.negf %43 : vector<8x128xf32>
    %45 = math.exp %44 : vector<8x128xf32>
    %cst_28 = arith.constant 1.000000e+00 : f32
    %46 = vector.broadcast %cst_28 : f32 to vector<8x128xf32>
    %47 = arith.addf %46, %45 : vector<8x128xf32>
    %48 = arith.divf %46, %47 : vector<8x128xf32>
    %c0_29 = arith.constant 0 : index
    %c0_30 = arith.constant 0 : index
    %49 = vector.load %arg4[%c0_29, %c0_30] : memref<8x128xf32, #tpu.memory_space<vmem>>, vector<8x128xf32>
    tpu.vector_store %arg4[%c0_29, %c0_30], %48 {strides = array<i32>} : memref<8x128xf32, #tpu.memory_space<vmem>>, vector<8x128xf32>,
    return
  }
  func.func @transform_0(%arg0: i32) -> (i32, i32) {
    %c0_i32 = arith.constant 0 : i32
    %c0_i32_0 = arith.constant 0 : i32
    return %arg0, %c0_i32 : i32, i32
  }
  func.func @transform_1(%arg0: i32) -> (i32, i32, i32) {
    %c0_i32 = arith.constant 0 : i32
    %c0_i32_0 = arith.constant 0 : i32
    %c0_i32_1 = arith.constant 0 : i32
    %c0_i32_2 = arith.constant 0 : i32
    return %c0_i32, %c0_i32_0, %c0_i32_1 : i32, i32, i32
  }
  func.func @transform_2(%arg0: i32) -> (i32, i32, i32) {
    %c0_i32 = arith.constant 0 : i32
    %c0_i32_0 = arith.constant 0 : i32
    %c0_i32_1 = arith.constant 0 : i32
    %c0_i32_2 = arith.constant 0 : i32
    return %c0_i32, %c0_i32_0, %c0_i32_1 : i32, i32, i32
  }
  func.func @transform_3(%arg0: i32) -> (i32, i32) {
    %c0_i32 = arith.constant 0 : i32
    %c0_i32_0 = arith.constant 0 : i32
    return %arg0, %c0_i32 : i32, i32
  }
}

</mosaic_0001>

<llo_original>
// kernel: tpu_custom_call.1
$region0: #{tpu_custom_call.1}
  #allocation0 [shape = 'u32[]', space=smem, size = 0x4, offset = 0x4, fixed_abs, tag = 'smem constant byte address 0x4 - core index']
  #allocation1 [shape = 'u32[72,128]{1,0:T(1,128)}', space=vmem, size = 0x9000, scoped, tag = 'internal scratch']
  %s0 = inlined_call_operand.hbm [shape: f32[8,128], index: 0, kind: input, shape index: {}]
  %s1 = inlined_call_operand.hbm [shape: f32[4,128,128], index: 1, kind: input, shape index: {}]
  %s2 = inlined_call_operand.hbm [shape: f32[4,1,128], index: 2, kind: input, shape index: {}]
  %s3 = inlined_call_operand.hbm [shape: f32[8,128], index: 3, kind: output, shape index: {}]
  %s4 = sld [smem:[#allocation0]]
  $region34: #{tpu_custom_call.1} parent=0
    _
  %s6 = ssub.s32 1, %s4
  %s7 = scalar_select 0, %s6, %s4
  $region1: #{tpu_custom_call.1} parent=0
    #allocation2 [shape = 'u8[4096]{0}', space=vmem, size = 0x1000, scoped, tag = 'input window, operand 0, single buffered']
    #allocation3 [shape = 's32[1]{0}', space=sflag, size = 0x4, scoped, tag = 'scoped memory for tpu_custom_call.1']
    #allocation4 [shape = 's32[1]{0}', space=sflag, size = 0x4, scoped, tag = 'scoped memory for tpu_custom_call.1']
    #allocation5 [shape = 'u8[262144]{0}', space=vmem, size = 0x40000, scoped, tag = 'input window, operand 1, single buffered']
    #allocation6 [shape = 's32[1]{0}', space=sflag, size = 0x4, scoped, tag = 'scoped memory for tpu_custom_call.1']
    #allocation7 [shape = 'u8[2048]{0}', space=vmem, size = 0x800, scoped, tag = 'input window, operand 2, single buffered']
    #allocation8 [shape = 'u8[4096]{0}', space=vmem, size = 0x1000, scoped, tag = 'output window, operand 0, single buffered']
    %8 = vsyncpa [#allocation3], 0
    %9 = vsyncpa [#allocation6], 0
    %10 = vsyncpa [#allocation4], 0
    // Predicated region
    $region2: #{tpu_custom_call.1} parent=1 // pred_check
      _
    $region3: #{tpu_custom_call.1} parent=1 // pred_check_branch
      %12 = sbr.rel (0) target = $region5
    $region4: #{tpu_custom_call.1} parent=1 // pred_region
      %14 = vsyncadd [#allocation3], 0
      %s16 = sshll.u32 %s0, 4
      %s17 = int_to_ptr.hbm [resolvable:$true] %s16
      %s18 = sshll.u32 [#allocation2], 4
      %s19 = int_to_ptr.vmem [resolvable:$true] %s18
      %21 = dma.hbm_to_vmem [thread:$0]  %s17, 128, %s19, [#allocation3]
    $region5: #{tpu_custom_call.1} parent=1 // pred_fallthru
      _
    // Predicated region
    $region6: #{tpu_custom_call.1} parent=1 // pred_check
      _
    $region7: #{tpu_custom_call.1} parent=1 // pred_check_branch
      %23 = sbr.rel (0) target = $region9
    $region8: #{tpu_custom_call.1} parent=1 // pred_region
      %25 = vsyncadd [#allocation6], 0
      %s26 = sshll.u32 %s1, 4
      %s27 = int_to_ptr.hbm [resolvable:$true] %s26
      %s28 = sshll.u32 [#allocation5], 4
      %s29 = int_to_ptr.vmem [resolvable:$true] %s28
      %34 = dma.hbm_to_vmem [thread:$0]  %s27, 8192, %s29, [#allocation6], 128, 128, 8
    $region9: #{tpu_custom_call.1} parent=1 // pred_fallthru
      _
    // Predicated region
    $region10: #{tpu_custom_call.1} parent=1 // pred_check
      _
    $region11: #{tpu_custom_call.1} parent=1 // pred_check_branch
      %36 = sbr.rel (0) target = $region13
    $region12: #{tpu_custom_call.1} parent=1 // pred_region
      %38 = vsyncadd [#allocation6], 0
      %s39 = sshll.u32 %s2, 4
      %s40 = int_to_ptr.hbm [resolvable:$true] %s39
      %s41 = sshll.u32 [#allocation7], 4
      %s42 = int_to_ptr.vmem [resolvable:$true] %s41
      %47 = dma.hbm_to_vmem [thread:$0]  %s40, 64, %s42, [#allocation6], 16, 16, 1
    $region13: #{tpu_custom_call.1} parent=1 // pred_fallthru
      _
    // Predicated region
    $region14: #{tpu_custom_call.1} parent=1 // pred_check
      _
    $region15: #{tpu_custom_call.1} parent=1 // pred_check_branch
      %49 = sbr.rel (0) target = $region17
    $region16: #{tpu_custom_call.1} parent=1 // pred_region
      %51 = dma.done [#allocation3], 128
    $region17: #{tpu_custom_call.1} parent=1 // pred_fallthru
      _
    // Predicated region
    $region18: #{tpu_custom_call.1} parent=1 // pred_check
      _
    $region19: #{tpu_custom_call.1} parent=1 // pred_check_branch
      %53 = sbr.rel (0) target = $region21
    $region20: #{tpu_custom_call.1} parent=1 // pred_region
      %55 = dma.done [#allocation6], 8192
    $region21: #{tpu_custom_call.1} parent=1 // pred_fallthru
      _
    // Predicated region
    $region22: #{tpu_custom_call.1} parent=1 // pred_check
      _
    $region23: #{tpu_custom_call.1} parent=1 // pred_check_branch
      %57 = sbr.rel (0) target = $region25
    $region24: #{tpu_custom_call.1} parent=1 // pred_region
      %59 = dma.done [#allocation6], 64
    $region25: #{tpu_custom_call.1} parent=1 // pred_fallthru
      _
    %v60 = vld [vmem:[#allocation2] sm:$0xff]
    %v61 = vld [vmem:[#allocation5] sm:$0xff]
    %v62 = vld [vmem:[#allocation5 + $0x8] sm:$0xff]
    %v63 = vld [vmem:[#allocation5 + $0x10] sm:$0xff]
    %v64 = vld [vmem:[#allocation5 + $0x18] sm:$0xff]
    %v65 = vld [vmem:[#allocation5 + $0x20] sm:$0xff]
    %v66 = vld [vmem:[#allocation5 + $0x28] sm:$0xff]
    %v67 = vld [vmem:[#allocation5 + $0x30] sm:$0xff]
    %v68 = vld [vmem:[#allocation5 + $0x38] sm:$0xff]
    %v69 = vld [vmem:[#allocation5 + $0x40] sm:$0xff]
    %v70 = vld [vmem:[#allocation5 + $0x48] sm:$0xff]
    %v71 = vld [vmem:[#allocation5 + $0x50] sm:$0xff]
    %v72 = vld [vmem:[#allocation5 + $0x58] sm:$0xff]
    %v73 = vld [vmem:[#allocation5 + $0x60] sm:$0xff]
    %v74 = vld [vmem:[#allocation5 + $0x68] sm:$0xff]
    %v75 = vld [vmem:[#allocation5 + $0x70] sm:$0xff]
    %v76 = vld [vmem:[#allocation5 + $0x78] sm:$0xff]
    %v77 = vld [vmem:[#allocation7] sm:$0x1]
    %v79 = vperm.slane %v77, 0
    %81 = vmatpush.msra.mxu0 %v76
    %82 = vmatpush.msra.mxu0 %v75
    %83 = vmatpush.msra.mxu0 %v74
    %84 = vmatpush.msra.mxu0 %v73
    %85 = vmatpush.msra.mxu0 %v72
    %86 = vmatpush.msra.mxu0 %v71
    %87 = vmatpush.msra.mxu0 %v70
    %88 = vmatpush.msra.mxu0 %v69
    %89 = vmatpush.msra.mxu0 %v68
    %90 = vmatpush.msra.mxu0 %v67
    %91 = vmatpush.msra.mxu0 %v66
    %92 = vmatpush.msra.mxu0 %v65
    %93 = vmatpush.msra.mxu0 %v64
    %94 = vmatpush.msra.mxu0 %v63
    %95 = vmatpush.msra.mxu0 %v62
    %96 = vmatpush.msra.mxu0 %v61
    %97 = vmatmul.f32.gmra.mxu0 %v60
    %v98 = vpop.f32.mrf.mxu0
    %v99 = vadd.f32 %v79, %v98
    %100 = vdwg.mxu0
    %v101 = vxor.u32 %v99, 2147483648
    %v102 = vmul.f32 %v101, 1.442695
    %v103 = vpow.pop %v102
    %v104 = vadd.f32 %v103, 1.0
    %v105 = vrcp.pop %v104
    %v106 = vmul.f32 %v104, %v105
    %v107 = vsub.f32 1.0, %v106
    %v108 = vmul.f32 %v105, %v107
    %v109 = vadd.f32 %v105, %v108
    %vm110 = vweird.f32 %v104
    %vm111 = vweird.f32 %v105
    %vm112 = vmor %vm110, %vm111
    %v113 = vsel %vm112, %v105, %v109
    %v114 = vand.u32 2147483647, %v104
    %vm115 = vcmp.eq.f32.partialorder %v114, 8.507059e+37
    %v116 = vand.u32 %v104, 2147483648
    %v117 = vor.u32 1.1754944e-38, %v116
    %v118 = vsel %vm115, %v117, %v113
    %v119 = vmul.f32 1.0, %v118
    %s120 = scalar_lea.vmem [#allocation5], 128
    %v121 = vld [vmem:[%s120] sm:$0xff]
    %v122 = vld [vmem:[%s120 + $0x8] sm:$0xff]
    %v123 = vld [vmem:[%s120 + $0x10] sm:$0xff]
    %v124 = vld [vmem:[%s120 + $0x18] sm:$0xff]
    %v125 = vld [vmem:[%s120 + $0x20] sm:$0xff]
    %v126 = vld [vmem:[%s120 + $0x28] sm:$0xff]
    %v127 = vld [vmem:[%s120 + $0x30] sm:$0xff]
    %v128 = vld [vmem:[%s120 + $0x38] sm:$0xff]
    %v129 = vld [vmem:[%s120 + $0x40] sm:$0xff]
    %v130 = vld [vmem:[%s120 + $0x48] sm:$0xff]
    %v131 = vld [vmem:[%s120 + $0x50] sm:$0xff]
    %v132 = vld [vmem:[%s120 + $0x58] sm:$0xff]
    %v133 = vld [vmem:[%s120 + $0x60] sm:$0xff]
    %v134 = vld [vmem:[%s120 + $0x68] sm:$0xff]
    %v135 = vld [vmem:[%s120 + $0x70] sm:$0xff]
    %v136 = vld [vmem:[%s120 + $0x78] sm:$0xff]
    %s137 = scalar_lea.vmem [#allocation7], 1
    %v138 = vld [vmem:[%s137] sm:$0x1]
    %v140 = vperm.slane %v138, 0
    %142 = vmatpush.msra.mxu0 %v136
    %143 = vmatpush.msra.mxu0 %v135
    %144 = vmatpush.msra.mxu0 %v134
    %145 = vmatpush.msra.mxu0 %v133
    %146 = vmatpush.msra.mxu0 %v132
    %147 = vmatpush.msra.mxu0 %v131
    %148 = vmatpush.msra.mxu0 %v130
    %149 = vmatpush.msra.mxu0 %v129
    %150 = vmatpush.msra.mxu0 %v128
    %151 = vmatpush.msra.mxu0 %v127
    %152 = vmatpush.msra.mxu0 %v126
    %153 = vmatpush.msra.mxu0 %v125
    %154 = vmatpush.msra.mxu0 %v124
    %155 = vmatpush.msra.mxu0 %v123
    %156 = vmatpush.msra.mxu0 %v122
    %157 = vmatpush.msra.mxu0 %v121
    %158 = vmatmul.f32.gmra.mxu0 %v119
    %v159 = vpop.f32.mrf.mxu0
    %v160 = vadd.f32 %v140, %v159
    %161 = vdwg.mxu0
    %v162 = vxor.u32 %v160, 2147483648
    %v163 = vmul.f32 %v162, 1.442695
    %v164 = vpow.pop %v163
    %v165 = vadd.f32 %v164, 1.0
    %v166 = vrcp.pop %v165
    %v167 = vmul.f32 %v165, %v166
    %v168 = vsub.f32 1.0, %v167
    %v169 = vmul.f32 %v166, %v168
    %v170 = vadd.f32 %v166, %v169
    %vm171 = vweird.f32 %v165
    %vm172 = vweird.f32 %v166
    %vm173 = vmor %vm171, %vm172
    %v174 = vsel %vm173, %v166, %v170
    %v175 = vand.u32 2147483647, %v165
    %vm176 = vcmp.eq.f32.partialorder %v175, 8.507059e+37
    %v177 = vand.u32 %v165, 2147483648
    %v178 = vor.u32 1.1754944e-38, %v177
    %v179 = vsel %vm176, %v178, %v174
    %v180 = vmul.f32 1.0, %v179
    %s181 = scalar_lea.vmem [#allocation5], 256
    %v182 = vld [vmem:[%s181] sm:$0xff]
    %v183 = vld [vmem:[%s181 + $0x8] sm:$0xff]
    %v184 = vld [vmem:[%s181 + $0x10] sm:$0xff]
    %v185 = vld [vmem:[%s181 + $0x18] sm:$0xff]
    %v186 = vld [vmem:[%s181 + $0x20] sm:$0xff]
    %v187 = vld [vmem:[%s181 + $0x28] sm:$0xff]
    %v188 = vld [vmem:[%s181 + $0x30] sm:$0xff]
    %v189 = vld [vmem:[%s181 + $0x38] sm:$0xff]
    %v190 = vld [vmem:[%s181 + $0x40] sm:$0xff]
    %v191 = vld [vmem:[%s181 + $0x48] sm:$0xff]
    %v192 = vld [vmem:[%s181 + $0x50] sm:$0xff]
    %v193 = vld [vmem:[%s181 + $0x58] sm:$0xff]
    %v194 = vld [vmem:[%s181 + $0x60] sm:$0xff]
    %v195 = vld [vmem:[%s181 + $0x68] sm:$0xff]
    %v196 = vld [vmem:[%s181 + $0x70] sm:$0xff]
    %v197 = vld [vmem:[%s181 + $0x78] sm:$0xff]
    %s198 = scalar_lea.vmem [#allocation7], 2
    %v199 = vld [vmem:[%s198] sm:$0x1]
    %v201 = vperm.slane %v199, 0
    %203 = vmatpush.msra.mxu0 %v197
    %204 = vmatpush.msra.mxu0 %v196
    %205 = vmatpush.msra.mxu0 %v195
    %206 = vmatpush.msra.mxu0 %v194
    %207 = vmatpush.msra.mxu0 %v193
    %208 = vmatpush.msra.mxu0 %v192
    %209 = vmatpush.msra.mxu0 %v191
    %210 = vmatpush.msra.mxu0 %v190
    %211 = vmatpush.msra.mxu0 %v189
    %212 = vmatpush.msra.mxu0 %v188
    %213 = vmatpush.msra.mxu0 %v187
    %214 = vmatpush.msra.mxu0 %v186
    %215 = vmatpush.msra.mxu0 %v185
    %216 = vmatpush.msra.mxu0 %v184
    %217 = vmatpush.msra.mxu0 %v183
    %218 = vmatpush.msra.mxu0 %v182
    %219 = vmatmul.f32.gmra.mxu0 %v180
    %v220 = vpop.f32.mrf.mxu0
    %v221 = vadd.f32 %v201, %v220
    %222 = vdwg.mxu0
    %v223 = vxor.u32 %v221, 2147483648
    %v224 = vmul.f32 %v223, 1.442695
    %v225 = vpow.pop %v224
    %v226 = vadd.f32 %v225, 1.0
    %v227 = vrcp.pop %v226
    %v228 = vmul.f32 %v226, %v227
    %v229 = vsub.f32 1.0, %v228
    %v230 = vmul.f32 %v227, %v229
    %v231 = vadd.f32 %v227, %v230
    %vm232 = vweird.f32 %v226
    %vm233 = vweird.f32 %v227
    %vm234 = vmor %vm232, %vm233
    %v235 = vsel %vm234, %v227, %v231
    %v236 = vand.u32 2147483647, %v226
    %vm237 = vcmp.eq.f32.partialorder %v236, 8.507059e+37
    %v238 = vand.u32 %v226, 2147483648
    %v239 = vor.u32 1.1754944e-38, %v238
    %v240 = vsel %vm237, %v239, %v235
    %v241 = vmul.f32 1.0, %v240
    %s242 = scalar_lea.vmem [#allocation5], 384
    %v243 = vld [vmem:[%s242] sm:$0xff]
    %v244 = vld [vmem:[%s242 + $0x8] sm:$0xff]
    %v245 = vld [vmem:[%s242 + $0x10] sm:$0xff]
    %v246 = vld [vmem:[%s242 + $0x18] sm:$0xff]
    %v247 = vld [vmem:[%s242 + $0x20] sm:$0xff]
    %v248 = vld [vmem:[%s242 + $0x28] sm:$0xff]
    %v249 = vld [vmem:[%s242 + $0x30] sm:$0xff]
    %v250 = vld [vmem:[%s242 + $0x38] sm:$0xff]
    %v251 = vld [vmem:[%s242 + $0x40] sm:$0xff]
    %v252 = vld [vmem:[%s242 + $0x48] sm:$0xff]
    %v253 = vld [vmem:[%s242 + $0x50] sm:$0xff]
    %v254 = vld [vmem:[%s242 + $0x58] sm:$0xff]
    %v255 = vld [vmem:[%s242 + $0x60] sm:$0xff]
    %v256 = vld [vmem:[%s242 + $0x68] sm:$0xff]
    %v257 = vld [vmem:[%s242 + $0x70] sm:$0xff]
    %v258 = vld [vmem:[%s242 + $0x78] sm:$0xff]
    %s259 = scalar_lea.vmem [#allocation7], 3
    %v260 = vld [vmem:[%s259] sm:$0x1]
    %v262 = vperm.slane %v260, 0
    %264 = vmatpush.msra.mxu0 %v258
    %265 = vmatpush.msra.mxu0 %v257
    %266 = vmatpush.msra.mxu0 %v256
    %267 = vmatpush.msra.mxu0 %v255
    %268 = vmatpush.msra.mxu0 %v254
    %269 = vmatpush.msra.mxu0 %v253
    %270 = vmatpush.msra.mxu0 %v252
    %271 = vmatpush.msra.mxu0 %v251
    %272 = vmatpush.msra.mxu0 %v250
    %273 = vmatpush.msra.mxu0 %v249
    %274 = vmatpush.msra.mxu0 %v248
    %275 = vmatpush.msra.mxu0 %v247
    %276 = vmatpush.msra.mxu0 %v246
    %277 = vmatpush.msra.mxu0 %v245
    %278 = vmatpush.msra.mxu0 %v244
    %279 = vmatpush.msra.mxu0 %v243
    %280 = vmatmul.f32.gmra.mxu0 %v241
    %v281 = vpop.f32.mrf.mxu0
    %v282 = vadd.f32 %v262, %v281
    %283 = vdwg.mxu0
    %v284 = vxor.u32 %v282, 2147483648
    %v285 = vmul.f32 %v284, 1.442695
    %v286 = vpow.pop %v285
    %v287 = vadd.f32 %v286, 1.0
    %v288 = vrcp.pop %v287
    %v289 = vmul.f32 %v287, %v288
    %v290 = vsub.f32 1.0, %v289
    %v291 = vmul.f32 %v288, %v290
    %v292 = vadd.f32 %v288, %v291
    %vm293 = vweird.f32 %v287
    %vm294 = vweird.f32 %v288
    %vm295 = vmor %vm293, %vm294
    %v296 = vsel %vm295, %v288, %v292
    %v297 = vand.u32 2147483647, %v287
    %vm298 = vcmp.eq.f32.partialorder %v297, 8.507059e+37
    %v299 = vand.u32 %v287, 2147483648
    %v300 = vor.u32 1.1754944e-38, %v299
    %v301 = vsel %vm298, %v300, %v296
    %v302 = vmul.f32 1.0, %v301
    %303 = vst [vmem:[#allocation8] sm:$0xff] %v302
    // Predicated region
    $region26: #{tpu_custom_call.1} parent=1 // pred_check
      _
    $region27: #{tpu_custom_call.1} parent=1 // pred_check_branch
      %305 = sbr.rel (0) target = $region29
    $region28: #{tpu_custom_call.1} parent=1 // pred_region
      %307 = vsyncadd [#allocation4], 0
      %s309 = sshll.u32 [#allocation8], 4
      %s310 = int_to_ptr.vmem [resolvable:$true] %s309
      %s311 = sshll.u32 %s3, 4
      %s312 = int_to_ptr.hbm [resolvable:$true] %s311
      %314 = dma.vmem_to_hbm [thread:$0]  %s310, 128, %s312, [#allocation4]
    $region29: #{tpu_custom_call.1} parent=1 // pred_fallthru
      _
    // Predicated region
    $region30: #{tpu_custom_call.1} parent=1 // pred_check
      _
    $region31: #{tpu_custom_call.1} parent=1 // pred_check_branch
      %316 = sbr.rel (0) target = $region33
    $region32: #{tpu_custom_call.1} parent=1 // pred_region
      %318 = dma.done [#allocation4], 128
    $region33: #{tpu_custom_call.1} parent=1 // pred_fallthru
      _
    %319 = vsyncpa [#allocation3], 1
    %320 = vsyncpa [#allocation6], 1
    %321 = vsyncpa [#allocation4], 1

</llo_original>
